<compile_context>
chip_gen: v7x
topology: tpu7x:2x2x1
jax: 0.10.0
libtpu: 0.0.40
codegen_flags: <defaults>
</compile_context>

<pallas_src>
import functools
from typing import NamedTuple, Tuple

import jax
import jax.numpy as jnp
from jax.experimental import pallas as pl
from jax.experimental.pallas import tpu as pltpu


def _round_up(x: int, m: int) -> int:
    return (x + m - 1) // m * m


class Dims(NamedTuple):
    P: int              # num proteins
    D: int              # num drugs
    F_prot: int         # protein input feature dim
    F_drug: int         # drug input feature dim
    n_hid1: int         # GCN1 output dim (32)
    prot_drug_dim: int  # hierarchy output dim (16)
    n_embed: int        # drug embedding dim (48)
    ffn_hidden: int     # n_hid2 + n_embed (64)
    U: int              # uni_num_drug (FFN2 output dim)
    o_mdp: int          # row offset of M' inside ops_blob
    w_off: Tuple[int, int, int, int, int]   # (w1, w2h, embed, ffn1_w, ffn2_w)
    b_off: Tuple[int, int, int, int, int]   # (b1, hier_bias, ffn1_b, ffn2_b, inv_dnorm)


# ----------------------------------------------------------------------------
# Single fused kernel: entire MyPDConv forward, everything resident in VMEM.
# Shapes are tiny; no grid, full-array VMEM blocks, 5 DMA streams total.
# ----------------------------------------------------------------------------
def _pd_conv_kernel(d: Dims, ops_ref, xp_ref, xd_ref, w_ref, b_ref,
                    out_ref, merge_scr):
    def mxu(a, b):
        # bf16 MXU operands (pre-cast inputs -> astype is a no-op for them),
        # f32 accumulation; all elementwise work stays f32 (v5e-safe).
        return jnp.dot(a.astype(jnp.bfloat16), b.astype(jnp.bfloat16),
                       preferred_element_type=jnp.float32)

    o_w1, o_w2h, o_emb, o_w3, o_w4 = d.w_off
    o_b1, o_hb, o_b3, o_b4, o_idn = d.b_off

    # --- unpack packed operands with static, aligned ref slices (no extra DMAs) ---
    a_pp = ops_ref[0:d.P, :]                                    # (P, P)  bf16
    m_dp = ops_ref[d.o_mdp:d.o_mdp + d.D, :]                    # (D, P)  bf16 == M_dp @ A_pp

    w1  = w_ref[o_w1:o_w1 + d.F_prot, 0:d.n_hid1]               # (F_prot, 32)
    w2h = w_ref[o_w2h:o_w2h + d.n_hid1, 0:d.prot_drug_dim]      # (32, 16) == W2 @ hgcn_w
    emb = w_ref[o_emb:o_emb + d.F_drug, 0:d.n_embed]            # (F_drug, 48)
    w3  = w_ref[o_w3:o_w3 + d.ffn_hidden, 0:d.ffn_hidden]       # (64, 64)  unsplit ffn1_w
    w4  = w_ref[o_w4:o_w4 + d.ffn_hidden, 0:d.U]                # (64, U)

    b1  = b_ref[o_b1:o_b1 + 1, 0:d.n_hid1]                      # (1, 32)  f32
    hb  = b_ref[o_hb:o_hb + d.D, 0:d.prot_drug_dim]             # (D, 16)  == r * (b2 @ hgcn_w)
    b3  = b_ref[o_b3:o_b3 + 1, 0:d.ffn_hidden]                  # (1, 64)
    b4  = b_ref[o_b4:o_b4 + 1, 0:d.U]                           # (1, U)
    idn = b_ref[o_idn:o_idn + d.D, 0:1]                         # (D, 1)   == 1 / d_norm

    # --- protein branch: GCN1 -> ReLU, then folded (GCN2 ∘ mean-aggr ∘ hier weight) ---
    h = mxu(a_pp, xp_ref[...])                                  # (P, F_prot)
    h = jnp.maximum(mxu(h, w1) + b1, 0.0)                       # (P, 32)
    x_prot_d = mxu(mxu(m_dp, h), w2h) + hb                      # (D, 16)

    # --- drug branch: embedding matmul + fused 1/d_norm row scaling ---
    x_d = mxu(xd_ref[...], emb) * idn                           # (D, 48)

    # --- FFN layer 1: stage both ReLU'd branches into one buffer, single MXU dot ---
    # (Dropout(0.4) is identity in eval mode.)
    merge_scr[:, 0:d.n_embed] = jnp.maximum(x_d, 0.0)
    merge_scr[:, d.n_embed:d.ffn_hidden] = jnp.maximum(x_prot_d, 0.0)
    h1 = mxu(merge_scr[...], w3) + b3                           # (D, 64)

    # --- FFN layer 2, then encoder sigmoid followed by MyPDConv sigmoid ---
    logits = mxu(jnp.maximum(h1, 0.0), w4) + b4                 # (D, U)
    out_ref[...] = jax.nn.sigmoid(jax.nn.sigmoid(logits)).astype(out_ref.dtype)


# ----------------------------------------------------------------------------
# Hot path: one pallas_call for the whole module.
# ----------------------------------------------------------------------------
@functools.partial(jax.jit, static_argnums=(0,))
def my_pd_conv_forward(dims: Dims, ops_blob, w_blob, b_blob, x_prot, x_drug):
    out = pl.pallas_call(
        functools.partial(_pd_conv_kernel, dims),
        out_shape=jax.ShapeDtypeStruct((dims.D, dims.U), jnp.float32),
        in_specs=[pl.BlockSpec(memory_space=pltpu.MemorySpace.VMEM)] * 5,
        out_specs=pl.BlockSpec(memory_space=pltpu.MemorySpace.VMEM),
        scratch_shapes=[pltpu.VMEM((dims.D, dims.ffn_hidden), jnp.float32)],
    )(ops_blob,
      x_prot.astype(jnp.bfloat16),
      x_drug.astype(jnp.bfloat16),
      w_blob, b_blob)
    return out.reshape(-1)                                      # outputs_g1


# ----------------------------------------------------------------------------
# One-time preparation (off the hot path): graph operators, operator folding,
# bf16 pre-cast, and packing into a few padded blobs.
# ----------------------------------------------------------------------------
def _pack(items, row_align, dtype):
    """Stack 2D arrays into one zero-padded blob; each item starts at a
    row offset aligned to `row_align`.  Returns (blob, row_offsets)."""
    width = max(int(a.shape[1]) for a in items)
    offs, rows = [], 0
    for a in items:
        offs.append(rows)
        rows += _round_up(int(a.shape[0]), row_align)
    rows = _round_up(rows, row_align)
    blob = jnp.zeros((rows, width), dtype)
    for a, o in zip(items, offs):
        blob = blob.at[o:o + a.shape[0], :a.shape[1]].set(a.astype(dtype))
    return blob, tuple(offs)


def prepare(params, pp_edge_index, dp_edge_index, num_prot, num_drug):
    f32 = jnp.float32
    P, D = num_prot, num_drug

    # --- GCNConv normalization: D^{-1/2} (A + I) D^{-1/2}, A[dst, src] += 1 ---
    src, dst = pp_edge_index
    A = jnp.zeros((P, P), f32).at[dst, src].add(1.0) + jnp.eye(P, dtype=f32)
    deg = A.sum(axis=1)
    dinv = jnp.where(deg > 0, jax.lax.rsqrt(deg), 0.0)
    A_pp = A * dinv[:, None] * dinv[None, :]

    # --- MyHierarchyConv aggr='mean': drug rows x PROTEIN source cols only.
    #     Denominator counts every incoming edge (drug-source messages are the
    #     zero hdrug rows in the reference, so dropping their columns is exact). ---
    dsrc, ddst = dp_edge_index
    row = ddst - P
    cnt = jnp.zeros((D,), f32).at[row].add(1.0)
    M = jnp.zeros((D, P), f32).at[row, dsrc].add(jnp.where(dsrc < P, 1.0, 0.0))
    M_dp = M / jnp.maximum(cnt, 1.0)[:, None]

    # --- operator folding (perf review): collapse 4 dependent dots into 2 ---
    M_fold = M_dp @ A_pp                                         # (D, P)
    w2h = params["gcn2_w"] @ params["hgcn_w"]                    # (32, 16)
    r = M_dp.sum(axis=1)                                         # (D,) fraction of prot edges
    hier_bias = r[:, None] * (params["gcn2_b"] @ params["hgcn_w"])[None, :]   # (D, 16)

    assert params["d_norm"].shape[0] == D, "reference d_norm broadcast needs len(d_norm)==num_drug"
    inv_dnorm = (1.0 / params["d_norm"]).reshape(D, 1)

    # --- pack bf16 MXU operands / f32 biases into a few padded blobs ---
    ops_blob, ops_off = _pack([A_pp, M_fold], row_align=16, dtype=jnp.bfloat16)
    w_blob, w_off = _pack(
        [params["gcn1_w"], w2h, params["embed"], params["ffn1_w"], params["ffn2_w"]],
        row_align=16, dtype=jnp.bfloat16)
    b_blob, b_off = _pack(
        [params["gcn1_b"].reshape(1, -1), hier_bias,
         params["ffn1_b"].reshape(1, -1), params["ffn2_b"].reshape(1, -1), inv_dnorm],
        row_align=8, dtype=jnp.float32)

    dims = Dims(
        P=P, D=D,
        F_prot=int(params["gcn1_w"].shape[0]),
        F_drug=int(params["embed"].shape[0]),
        n_hid1=int(params["gcn1_w"].shape[1]),
        prot_drug_dim=int(params["hgcn_w"].shape[1]),
        n_embed=int(params["embed"].shape[1]),
        ffn_hidden=int(params["ffn1_w"].shape[0]),
        U=int(params["ffn2_w"].shape[1]),
        o_mdp=ops_off[1], w_off=w_off, b_off=b_off,
    )
    return dims, ops_blob, w_blob, b_blob


# ----------------------------------------------------------------------------
# Deterministic parameter init (shapes from the module __init__)
# ----------------------------------------------------------------------------
def init_params(key, in_dim_prot, in_dim_drug, uni_num_drug,
                prot_drug_dim=16, n_embed=48, n_hid1=32, n_hid2=16):
    ks = jax.random.split(key, 8)
    ffn_hidden = n_hid2 + n_embed
    params = {
        # PPEncoder GCNConv weights stored as (in, out); biases (out,)
        "gcn1_w": jax.random.normal(ks[0], (in_dim_prot, n_hid1)) / jnp.sqrt(in_dim_prot),
        "gcn1_b": jnp.zeros((n_hid1,), jnp.float32),
        "gcn2_w": jax.random.normal(ks[1], (n_hid1, n_hid2)) / jnp.sqrt(n_hid1),
        "gcn2_b": jnp.zeros((n_hid2,), jnp.float32),
        # FMEncoderCat.embed ~ N(0,1)
        "embed": jax.random.normal(ks[2], (in_dim_drug, n_embed)),
        # MyHierarchyConv.weight ~ N(0, 1/sqrt(in_dim)) (is_after_relu=True, no bias)
        "hgcn_w": jax.random.normal(ks[3], (n_hid2, prot_drug_dim)) / jnp.sqrt(n_hid2),
        # d_norm = ones(in_dim_drug)
        "d_norm": jnp.ones((in_dim_drug,), jnp.float32),
        # FFN linears (PyTorch (out,in) stored transposed as (in,out))
        "ffn1_w": jax.random.uniform(ks[4], (ffn_hidden, ffn_hidden),
                                     minval=-1.0, maxval=1.0) / jnp.sqrt(ffn_hidden),
        "ffn1_b": jax.random.uniform(ks[5], (ffn_hidden,),
                                     minval=-1.0, maxval=1.0) / jnp.sqrt(ffn_hidden),
        "ffn2_w": jax.random.uniform(ks[6], (ffn_hidden, uni_num_drug),
                                     minval=-1.0, maxval=1.0) / jnp.sqrt(ffn_hidden),
        "ffn2_b": jax.random.uniform(ks[7], (uni_num_drug,),
                                     minval=-1.0, maxval=1.0) / jnp.sqrt(ffn_hidden),
    }
    return {k: v.astype(jnp.float32) for k, v in params.items()}


if __name__ == "__main__":
    key = jax.random.PRNGKey(0)
    k_x, k_d, k_e1, k_e2, k_e3, k_p = jax.random.split(key, 6)

    # small synthetic sizes consistent with the module
    n_prot, in_dim_prot = 32, 16          # uni_num_prot = n_prot
    n_drug, in_dim_drug = 8, 8            # one-hot-style drug feats: in_dim_drug == n_drug
    assert in_dim_drug == n_drug          # required by the reference d_norm broadcast

    x_prot = jax.random.normal(k_x, (n_prot, in_dim_prot), jnp.float32)
    x_drug = jax.random.normal(k_d, (n_drug, in_dim_drug), jnp.float32)

    # protein-protein edges (directed, within [0, n_prot))
    pp_src = jax.random.randint(k_e1, (64,), 0, n_prot)
    pp_dst = jax.random.randint(k_e2, (64,), 0, n_prot)
    pp_edge_index = jnp.stack([pp_src, pp_dst])

    # drug-protein edges: protein sources [0, n_prot) -> drug targets [n_prot, n_prot+n_drug)
    dp_src = jax.random.randint(k_e3, (24,), 0, n_prot)
    dp_dst = n_prot + (jnp.arange(24) % n_drug)
    dp_edge_index = jnp.stack([dp_src, dp_dst])

    params = init_params(k_p, in_dim_prot, in_dim_drug, n_drug)

    # One-time prep (off the hot path): graph operators, operator folding,
    # bf16 pre-cast, packing into 3 blobs (+2 activations) -> 5 DMA streams.
    dims, ops_blob, w_blob, b_blob = prepare(params, pp_edge_index, dp_edge_index,
                                             n_prot, n_drug)

    out = my_pd_conv_forward(dims, ops_blob, w_blob, b_blob, x_prot, x_drug)
    out = jax.block_until_ready(out)

    assert out.shape == (n_drug * n_drug,)
    assert bool(jnp.all(jnp.isfinite(out)))
    print("KERNEL_OK")
</pallas_src>

<mosaic_0001>
module attributes {stable_mosaic.version = 11 : i64} {
  func.func @_pd_conv_kernel(%arg0: memref<48x32xbf16, #tpu.memory_space<vmem>>, %arg1: memref<32x16xbf16, #tpu.memory_space<vmem>>, %arg2: memref<8x8xbf16, #tpu.memory_space<vmem>>, %arg3: memref<192x64xbf16, #tpu.memory_space<vmem>>, %arg4: memref<40x64xf32, #tpu.memory_space<vmem>>, %arg5: memref<8x8xf32, #tpu.memory_space<vmem>>, %arg6: memref<8x64xf32, #tpu.memory_space<vmem>>) attributes {dimension_semantics = [], scalar_prefetch = 0 : i64, scratch_operands = 1 : i64, tpu.core_type = #tpu.core_type<tc>} {
    %c0 = arith.constant 0 : index
    %c0_0 = arith.constant 0 : index
    %0 = vector.load %arg0[%c0, %c0_0] : memref<48x32xbf16, #tpu.memory_space<vmem>>, vector<32x32xbf16>
    %c32 = arith.constant 32 : index
    %c0_1 = arith.constant 0 : index
    %1 = vector.load %arg0[%c32, %c0_1] : memref<48x32xbf16, #tpu.memory_space<vmem>>, vector<8x32xbf16>
    %c0_2 = arith.constant 0 : index
    %c0_3 = arith.constant 0 : index
    %2 = vector.load %arg3[%c0_2, %c0_3] : memref<192x64xbf16, #tpu.memory_space<vmem>>, vector<16x32xbf16>
    %c16 = arith.constant 16 : index
    %c0_4 = arith.constant 0 : index
    %3 = vector.load %arg3[%c16, %c0_4] : memref<192x64xbf16, #tpu.memory_space<vmem>>, vector<32x16xbf16>
    %c48 = arith.constant 48 : index
    %c0_5 = arith.constant 0 : index
    %4 = vector.load %arg3[%c48, %c0_5] : memref<192x64xbf16, #tpu.memory_space<vmem>>, vector<8x48xbf16>
    %c64 = arith.constant 64 : index
    %c0_6 = arith.constant 0 : index
    %5 = vector.load %arg3[%c64, %c0_6] : memref<192x64xbf16, #tpu.memory_space<vmem>>, vector<64x64xbf16>
    %c128 = arith.constant 128 : index
    %c0_7 = arith.constant 0 : index
    %6 = vector.load %arg3[%c128, %c0_7] : memref<192x64xbf16, #tpu.memory_space<vmem>>, vector<64x8xbf16>
    %c0_8 = arith.constant 0 : index
    %c0_9 = arith.constant 0 : index
    %7 = vector.load %arg4[%c0_8, %c0_9] : memref<40x64xf32, #tpu.memory_space<vmem>>, vector<1x32xf32>
    %c8 = arith.constant 8 : index
    %c0_10 = arith.constant 0 : index
    %8 = vector.load %arg4[%c8, %c0_10] : memref<40x64xf32, #tpu.memory_space<vmem>>, vector<8x16xf32>
    %c16_11 = arith.constant 16 : index
    %c0_12 = arith.constant 0 : index
    %9 = vector.load %arg4[%c16_11, %c0_12] : memref<40x64xf32, #tpu.memory_space<vmem>>, vector<1x64xf32>
    %c24 = arith.constant 24 : index
    %c0_13 = arith.constant 0 : index
    %10 = vector.load %arg4[%c24, %c0_13] : memref<40x64xf32, #tpu.memory_space<vmem>>, vector<1x8xf32>
    %c32_14 = arith.constant 32 : index
    %c0_15 = arith.constant 0 : index
    %11 = vector.load %arg4[%c32_14, %c0_15] : memref<40x64xf32, #tpu.memory_space<vmem>>, vector<8x1xf32>
    %c0_16 = arith.constant 0 : index
    %c0_17 = arith.constant 0 : index
    %12 = vector.load %arg1[%c0_16, %c0_17] : memref<32x16xbf16, #tpu.memory_space<vmem>>, vector<32x16xbf16>
    %cst = arith.constant dense<0.000000e+00> : vector<32x16xf32>
    %13 = tpu.matmul %0, %12, %cst {dimension_numbers = #tpu.dot_dimension_numbers<[1], [0], [0], [1], [0, 0, 1, 1], [], []>} : vector<32x32xbf16>, vector<32x16xbf16>, vector<32x16xf32> -> vector<32x16xf32>
    %14 = arith.truncf %13 : vector<32x16xf32> to vector<32x16xbf16>
    %cst_18 = arith.constant dense<0.000000e+00> : vector<32x32xf32>
    %15 = tpu.matmul %14, %2, %cst_18 {dimension_numbers = #tpu.dot_dimension_numbers<[1], [0], [0], [1], [0, 0, 1, 1], [], []>} : vector<32x16xbf16>, vector<16x32xbf16>, vector<32x32xf32> -> vector<32x32xf32>
    %16 = vector.broadcast %7 : vector<1x32xf32> to vector<32x32xf32>
    %17 = arith.addf %15, %16 : vector<32x32xf32>
    %cst_19 = arith.constant 0.000000e+00 : f32
    %18 = vector.broadcast %cst_19 : f32 to vector<32x32xf32>
    %19 = arith.maximumf %17, %18 : vector<32x32xf32>
    %20 = arith.truncf %19 : vector<32x32xf32> to vector<32x32xbf16>
    %cst_20 = arith.constant dense<0.000000e+00> : vector<8x32xf32>
    %21 = tpu.matmul %1, %20, %cst_20 {dimension_numbers = #tpu.dot_dimension_numbers<[1], [0], [0], [1], [0, 0, 1, 1], [], []>} : vector<8x32xbf16>, vector<32x32xbf16>, vector<8x32xf32> -> vector<8x32xf32>
    %22 = arith.truncf %21 : vector<8x32xf32> to vector<8x32xbf16>
    %cst_21 = arith.constant dense<0.000000e+00> : vector<8x16xf32>
    %23 = tpu.matmul %22, %3, %cst_21 {dimension_numbers = #tpu.dot_dimension_numbers<[1], [0], [0], [1], [0, 0, 1, 1], [], []>} : vector<8x32xbf16>, vector<32x16xbf16>, vector<8x16xf32> -> vector<8x16xf32>
    %24 = arith.addf %23, %8 : vector<8x16xf32>
    %c0_22 = arith.constant 0 : index
    %c0_23 = arith.constant 0 : index
    %25 = vector.load %arg2[%c0_22, %c0_23] : memref<8x8xbf16, #tpu.memory_space<vmem>>, vector<8x8xbf16>
    %cst_24 = arith.constant dense<0.000000e+00> : vector<8x48xf32>
    %26 = tpu.matmul %25, %4, %cst_24 {dimension_numbers = #tpu.dot_dimension_numbers<[1], [0], [0], [1], [0, 0, 1, 1], [], []>} : vector<8x8xbf16>, vector<8x48xbf16>, vector<8x48xf32> -> vector<8x48xf32>
    %27 = vector.broadcast %11 : vector<8x1xf32> to vector<8x48xf32>
    %28 = arith.mulf %26, %27 : vector<8x48xf32>
    %cst_25 = arith.constant 0.000000e+00 : f32
    %29 = vector.broadcast %cst_25 : f32 to vector<8x48xf32>
    %30 = arith.maximumf %28, %29 : vector<8x48xf32>
    %c0_26 = arith.constant 0 : index
    %c0_27 = arith.constant 0 : index
    %31 = vector.load %arg6[%c0_26, %c0_27] : memref<8x64xf32, #tpu.memory_space<vmem>>, vector<8x48xf32>
    tpu.vector_store %arg6[%c0_26, %c0_27], %30 {strides = array<i32>} : memref<8x64xf32, #tpu.memory_space<vmem>>, vector<8x48xf32>,
    %cst_28 = arith.constant 0.000000e+00 : f32
    %32 = vector.broadcast %cst_28 : f32 to vector<8x16xf32>
    %33 = arith.maximumf %24, %32 : vector<8x16xf32>
    %c0_29 = arith.constant 0 : index
    %c48_30 = arith.constant 48 : index
    %34 = vector.load %arg6[%c0_29, %c48_30] : memref<8x64xf32, #tpu.memory_space<vmem>>, vector<8x16xf32>
    tpu.vector_store %arg6[%c0_29, %c48_30], %33 {strides = array<i32>} : memref<8x64xf32, #tpu.memory_space<vmem>>, vector<8x16xf32>,
    %c0_31 = arith.constant 0 : index
    %c0_32 = arith.constant 0 : index
    %35 = vector.load %arg6[%c0_31, %c0_32] : memref<8x64xf32, #tpu.memory_space<vmem>>, vector<8x64xf32>
    %36 = arith.truncf %35 : vector<8x64xf32> to vector<8x64xbf16>
    %cst_33 = arith.constant dense<0.000000e+00> : vector<8x64xf32>
    %37 = tpu.matmul %36, %5, %cst_33 {dimension_numbers = #tpu.dot_dimension_numbers<[1], [0], [0], [1], [0, 0, 1, 1], [], []>} : vector<8x64xbf16>, vector<64x64xbf16>, vector<8x64xf32> -> vector<8x64xf32>
    %38 = vector.broadcast %9 : vector<1x64xf32> to vector<8x64xf32>
    %39 = arith.addf %37, %38 : vector<8x64xf32>
    %cst_34 = arith.constant 0.000000e+00 : f32
    %40 = vector.broadcast %cst_34 : f32 to vector<8x64xf32>
    %41 = arith.maximumf %39, %40 : vector<8x64xf32>
    %42 = arith.truncf %41 : vector<8x64xf32> to vector<8x64xbf16>
    %cst_35 = arith.constant dense<0.000000e+00> : vector<8x8xf32>
    %43 = tpu.matmul %42, %6, %cst_35 {dimension_numbers = #tpu.dot_dimension_numbers<[1], [0], [0], [1], [0, 0, 1, 1], [], []>} : vector<8x64xbf16>, vector<64x8xbf16>, vector<8x8xf32> -> vector<8x8xf32>
    %44 = vector.broadcast %10 : vector<1x8xf32> to vector<8x8xf32>
    %45 = arith.addf %43, %44 : vector<8x8xf32>
    %46 = arith.negf %45 : vector<8x8xf32>
    %47 = math.exp %46 : vector<8x8xf32>
    %cst_36 = arith.constant 1.000000e+00 : f32
    %48 = vector.broadcast %cst_36 : f32 to vector<8x8xf32>
    %49 = arith.addf %48, %47 : vector<8x8xf32>
    %50 = arith.divf %48, %49 : vector<8x8xf32>
    %51 = arith.negf %50 : vector<8x8xf32>
    %52 = math.exp %51 : vector<8x8xf32>
    %cst_37 = arith.constant 1.000000e+00 : f32
    %53 = vector.broadcast %cst_37 : f32 to vector<8x8xf32>
    %54 = arith.addf %53, %52 : vector<8x8xf32>
    %55 = arith.divf %53, %54 : vector<8x8xf32>
    %c0_38 = arith.constant 0 : index
    %c0_39 = arith.constant 0 : index
    %56 = vector.load %arg5[%c0_38, %c0_39] : memref<8x8xf32, #tpu.memory_space<vmem>>, vector<8x8xf32>
    tpu.vector_store %arg5[%c0_38, %c0_39], %55 {strides = array<i32>} : memref<8x8xf32, #tpu.memory_space<vmem>>, vector<8x8xf32>,
    return
  }
}

</mosaic_0001>

<llo_original>
// kernel: my_pd_conv_forward.1
$region0: #{my_pd_conv_forward.1}
  #allocation0 [shape = 'u32[]', space=smem, size = 0x4, offset = 0x4, fixed_abs, tag = 'smem constant byte address 0x4 - core index']
  #allocation1 [shape = 'u32[144,128]{1,0:T(1,128)}', space=vmem, size = 0x12000, scoped, tag = 'internal scratch']
  #allocation2 [shape = 'f32[8,64]{1,0:T(8,128)}', space=vmem, size = 0x1000, scoped, tag = 'scratch operand']
  %s0 = inlined_call_operand.vmem [shape: bf16[48,32], index: 0, kind: input, shape index: {}]
  %s1 = inlined_call_operand.vmem [shape: bf16[32,16], index: 1, kind: input, shape index: {}]
  %s2 = inlined_call_operand.vmem [shape: bf16[8,8], index: 2, kind: input, shape index: {}]
  %s3 = inlined_call_operand.vmem [shape: bf16[192,64], index: 3, kind: input, shape index: {}]
  %s4 = inlined_call_operand.vmem [shape: f32[40,64], index: 4, kind: input, shape index: {}]
  %s5 = inlined_call_operand.vmem [shape: f32[8,8], index: 5, kind: output, shape index: {}]
  %s6 = sld [smem:[#allocation0]]
  $region30: #{my_pd_conv_forward.1} parent=0
    _
  %s8 = ssub.s32 1, %s6
  %s9 = scalar_select 0, %s8, %s6
  // Predicated region
  $region2: #{my_pd_conv_forward.1} parent=0 // pred_check
    _
  $region3: #{my_pd_conv_forward.1} parent=0 // pred_check_branch
    %11 = sbr.rel (0) target = $region5
  $region4: #{my_pd_conv_forward.1} parent=0 // pred_region
    _
  $region5: #{my_pd_conv_forward.1} parent=0 // pred_fallthru
    _
  // Predicated region
  $region6: #{my_pd_conv_forward.1} parent=0 // pred_check
    _
  $region7: #{my_pd_conv_forward.1} parent=0 // pred_check_branch
    %13 = sbr.rel (0) target = $region9
  $region8: #{my_pd_conv_forward.1} parent=0 // pred_region
    _
  $region9: #{my_pd_conv_forward.1} parent=0 // pred_fallthru
    _
  // Predicated region
  $region10: #{my_pd_conv_forward.1} parent=0 // pred_check
    _
  $region11: #{my_pd_conv_forward.1} parent=0 // pred_check_branch
    %15 = sbr.rel (0) target = $region13
  $region12: #{my_pd_conv_forward.1} parent=0 // pred_region
    _
  $region13: #{my_pd_conv_forward.1} parent=0 // pred_fallthru
    _
  // Predicated region
  $region14: #{my_pd_conv_forward.1} parent=0 // pred_check
    _
  $region15: #{my_pd_conv_forward.1} parent=0 // pred_check_branch
    %17 = sbr.rel (0) target = $region17
  $region16: #{my_pd_conv_forward.1} parent=0 // pred_region
    _
  $region17: #{my_pd_conv_forward.1} parent=0 // pred_fallthru
    _
  // Predicated region
  $region18: #{my_pd_conv_forward.1} parent=0 // pred_check
    _
  $region19: #{my_pd_conv_forward.1} parent=0 // pred_check_branch
    %19 = sbr.rel (0) target = $region21
  $region20: #{my_pd_conv_forward.1} parent=0 // pred_region
    _
  $region21: #{my_pd_conv_forward.1} parent=0 // pred_fallthru
    _
  %v21 = vld [vmem:[%s0] sm:$0xf]
  %v22 = vld [vmem:[%s0 + $0x4] sm:$0xf]
  %v23 = vld [vmem:[%s0 + $0x8] sm:$0xf]
  %v24 = vld [vmem:[%s0 + $0xc] sm:$0xf]
  %v25 = vld [vmem:[%s0 + $0x10] sm:$0xf]
  %v26 = vld [vmem:[%s3] sm:$0xf]
  %v27 = vld [vmem:[%s3 + $0x4] sm:$0xf]
  %v28 = vld [vmem:[%s3 + $0x8] sm:$0xf]
  %v29 = vld [vmem:[%s3 + $0xc] sm:$0xf]
  %v30 = vld [vmem:[%s3 + $0x10] sm:$0xf]
  %v31 = vld [vmem:[%s3 + $0x14] sm:$0xf]
  %v32 = vld [vmem:[%s3 + $0x18] sm:$0xf]
  %v33 = vld [vmem:[%s3 + $0x20] sm:$0xf]
  %v34 = vld [vmem:[%s3 + $0x24] sm:$0xf]
  %v35 = vld [vmem:[%s3 + $0x28] sm:$0xf]
  %v36 = vld [vmem:[%s3 + $0x2c] sm:$0xf]
  %v37 = vld [vmem:[%s3 + $0x30] sm:$0xf]
  %v38 = vld [vmem:[%s3 + $0x34] sm:$0xf]
  %v39 = vld [vmem:[%s3 + $0x38] sm:$0xf]
  %v40 = vld [vmem:[%s3 + $0x3c] sm:$0xf]
  %v41 = vld [vmem:[%s3 + $0x40] sm:$0xf]
  %v42 = vld [vmem:[%s3 + $0x44] sm:$0xf]
  %v43 = vld [vmem:[%s3 + $0x48] sm:$0xf]
  %v44 = vld [vmem:[%s3 + $0x4c] sm:$0xf]
  %v45 = vld [vmem:[%s3 + $0x50] sm:$0xf]
  %v46 = vld [vmem:[%s3 + $0x54] sm:$0xf]
  %v47 = vld [vmem:[%s3 + $0x58] sm:$0xf]
  %v48 = vld [vmem:[%s3 + $0x5c] sm:$0xf]
  %v49 = vld [vmem:[%s4] sm:$0x1]
  %v50 = vld [vmem:[%s4 + $0x8] sm:$0xff]
  %v51 = vld [vmem:[%s4 + $0x10] sm:$0x1]
  %v52 = vld [vmem:[%s4 + $0x18] sm:$0x1]
  %v53 = vld [vmem:[%s4 + $0x20] sm:$0xff]
  %v54 = vld [vmem:[%s1] sm:$0xf]
  %v55 = vld [vmem:[%s1 + $0x4] sm:$0xf]
  %v56 = vld [vmem:[%s1 + $0x8] sm:$0xf]
  %v57 = vld [vmem:[%s1 + $0xc] sm:$0xf]
  %v62 = vunpack.c.l.b16 %v21
  %v63 = vunpack.c.l.b16 %v22
  %v64 = vunpack.c.l.b16 %v23
  %v65 = vunpack.c.l.b16 %v24
  %v66 = vpack.c.b16 %v63, %v62
  %v67 = vpack.c.b16 %v65, %v64
  %v72 = vunpack.c.l.b16 %v54
  %v73 = vunpack.c.l.b16 %v55
  %v74 = vunpack.c.l.b16 %v56
  %v75 = vunpack.c.l.b16 %v57
  %v76 = vpack.c.b16 %v73, %v72
  %v77 = vpack.c.b16 %v75, %v74
  %vm80 = vcmask 261120
  %v82 = vsel %vm80, %v66, 0
  %v85 = vsel %vm80, %v67, 0
  %87 = vmatprep.subr.bf16.mxu0 0
  %88 = vmatpush1.bf16.msra.mxu0 %v76
  %89 = vmatprep.subr.bf16.mxu0 0
  %90 = vmatpush1.bf16.msra.mxu0 %v77
  %91 = vmatprep.subr.bf16.mxu0 0
  %92 = vmatpush1.bf16.msra.mxu0 0
  %93 = vmatprep.subr.bf16.mxu0 0
  %94 = vmatpush1.bf16.msra.mxu0 0
  %95 = vmatprep.subr.bf16.mxu0 0
  %96 = vmatpush1.bf16.msra.mxu0 0
  %97 = vmatprep.subr.bf16.mxu0 0
  %98 = vmatpush1.bf16.msra.mxu0 0
  %99 = vmatprep.subr.bf16.mxu0 0
  %100 = vmatpush1.bf16.msra.mxu0 0
  %101 = vmatprep.subr.bf16.mxu0 0
  %102 = vmatpush1.bf16.msra.mxu0 0
  %103 = vmatprep.subr.bf16.mxu0 0
  %104 = vmatpush1.bf16.msra.mxu0 0
  %105 = vmatprep.subr.bf16.mxu0 0
  %106 = vmatpush1.bf16.msra.mxu0 0
  %107 = vmatprep.subr.bf16.mxu0 0
  %108 = vmatpush1.bf16.msra.mxu0 0
  %109 = vmatprep.subr.bf16.mxu0 0
  %110 = vmatpush1.bf16.msra.mxu0 0
  %111 = vmatprep.subr.bf16.mxu0 0
  %112 = vmatpush1.bf16.msra.mxu0 0
  %113 = vmatprep.subr.bf16.mxu0 0
  %114 = vmatpush1.bf16.msra.mxu0 0
  %115 = vmatprep.subr.bf16.mxu0 0
  %116 = vmatpush1.bf16.msra.mxu0 0
  %117 = vmatprep.subr.bf16.mxu0 0
  %118 = vmatpush1.bf16.msra.mxu0 0
  %119 = vmatprep.mubr.bf16.mxu0 0
  %120 = vmatmul.mubr.bf16.gmra.mrb[0].mxu0 %v82
  %v121 = vpop.f32.mrb[0].mxu0
  %v122 = vadd.f32 0.0, %v121
  %v123 = vpop.f32.mrb[0].mxu0
  %v124 = vpop.f32.mrb[0].mxu0
  %v125 = vadd.f32 0.0, %v124
  %v126 = vpop.f32.mrb[0].mxu0
  %127 = vmatprep.mubr.bf16.mxu0 0
  %128 = vmatmul.mubr.bf16.gmra.mrb[0].mxu0 %v85
  %v129 = vpop.f32.mrb[0].mxu0
  %v130 = vadd.f32 0.0, %v129
  %v131 = vpop.f32.mrb[0].mxu0
  %v132 = vpop.f32.mrb[0].mxu0
  %v133 = vadd.f32 0.0, %v132
  %v134 = vpop.f32.mrb[0].mxu0
  %135 = vdwg.mxu0
  %v136 = vpack.c.bf16 %v125, %v122
  %v137 = vpack.c.bf16 %v133, %v130
  %v138 = vlaneseq
  %v139 = vshrl.u32 %v138, 7
  %v140 = vsub.s32 0, %v139
  %v141 = vrot.slane %v49, %v140
  %v144 = vunpack.c.l.b16 %v26
  %v145 = vunpack.c.l.b16 %v27
  %v146 = vpack.c.b16 %v145, %v144
  %vm148 = vcmask 130048
  %v150 = vsel %vm148, %v136, 0
  %v153 = vsel %vm148, %v137, 0
  %155 = vmatprep.subr.bf16.mxu0 0
  %156 = vmatpush1.bf16.msra.mxu0 %v146
  %157 = vmatprep.subr.bf16.mxu0 0
  %158 = vmatpush1.bf16.msra.mxu0 0
  %159 = vmatprep.subr.bf16.mxu0 0
  %160 = vmatpush1.bf16.msra.mxu0 0
  %161 = vmatprep.subr.bf16.mxu0 0
  %162 = vmatpush1.bf16.msra.mxu0 0
  %163 = vmatprep.subr.bf16.mxu0 0
  %164 = vmatpush1.bf16.msra.mxu0 0
  %165 = vmatprep.subr.bf16.mxu0 0
  %166 = vmatpush1.bf16.msra.mxu0 0
  %167 = vmatprep.subr.bf16.mxu0 0
  %168 = vmatpush1.bf16.msra.mxu0 0
  %169 = vmatprep.subr.bf16.mxu0 0
  %170 = vmatpush1.bf16.msra.mxu0 0
  %171 = vmatprep.subr.bf16.mxu0 0
  %172 = vmatpush1.bf16.msra.mxu0 0
  %173 = vmatprep.subr.bf16.mxu0 0
  %174 = vmatpush1.bf16.msra.mxu0 0
  %175 = vmatprep.subr.bf16.mxu0 0
  %176 = vmatpush1.bf16.msra.mxu0 0
  %177 = vmatprep.subr.bf16.mxu0 0
  %178 = vmatpush1.bf16.msra.mxu0 0
  %179 = vmatprep.subr.bf16.mxu0 0
  %180 = vmatpush1.bf16.msra.mxu0 0
  %181 = vmatprep.subr.bf16.mxu0 0
  %182 = vmatpush1.bf16.msra.mxu0 0
  %183 = vmatprep.subr.bf16.mxu0 0
  %184 = vmatpush1.bf16.msra.mxu0 0
  %185 = vmatprep.subr.bf16.mxu0 0
  %186 = vmatpush1.bf16.msra.mxu0 0
  %187 = vmatprep.mubr.bf16.mxu0 0
  %188 = vmatmul.mubr.bf16.gmra.mrb[0].mxu0 %v150
  %v189 = vpop.f32.mrb[0].mxu0
  %v190 = vadd.f32 %v141, %v189
  %v191 = vpop.f32.mrb[0].mxu0
  %v192 = vpop.f32.mrb[0].mxu0
  %v193 = vadd.f32 %v141, %v192
  %v194 = vpop.f32.mrb[0].mxu0
  %195 = vmatprep.mubr.bf16.mxu0 0
  %196 = vmatmul.mubr.bf16.gmra.mrb[0].mxu0 %v153
  %v197 = vpop.f32.mrb[0].mxu0
  %v198 = vadd.f32 %v141, %v197
  %v199 = vpop.f32.mrb[0].mxu0
  %v200 = vpop.f32.mrb[0].mxu0
  %v201 = vadd.f32 %v141, %v200
  %v202 = vpop.f32.mrb[0].mxu0
  %203 = vdwg.mxu0
  %v204 = vmax.f32 %v190, 0.0
  %v205 = vmax.f32 %v193, 0.0
  %v206 = vmax.f32 %v198, 0.0
  %v207 = vmax.f32 %v201, 0.0
  %v208 = vpack.c.bf16 %v205, %v204
  %v209 = vpack.c.bf16 %v207, %v206
  %v211 = vsel %vm80, %v25, 0
  %213 = vmatprep.subr.bf16.mxu0 0
  %214 = vmatpush1.bf16.msra.mxu0 %v208
  %215 = vmatprep.subr.bf16.mxu0 0
  %216 = vmatpush1.bf16.msra.mxu0 %v209
  %217 = vmatprep.subr.bf16.mxu0 0
  %218 = vmatpush1.bf16.msra.mxu0 0
  %219 = vmatprep.subr.bf16.mxu0 0
  %220 = vmatpush1.bf16.msra.mxu0 0
  %221 = vmatprep.subr.bf16.mxu0 0
  %222 = vmatpush1.bf16.msra.mxu0 0
  %223 = vmatprep.subr.bf16.mxu0 0
  %224 = vmatpush1.bf16.msra.mxu0 0
  %225 = vmatprep.subr.bf16.mxu0 0
  %226 = vmatpush1.bf16.msra.mxu0 0
  %227 = vmatprep.subr.bf16.mxu0 0
  %228 = vmatpush1.bf16.msra.mxu0 0
  %229 = vmatprep.subr.bf16.mxu0 0
  %230 = vmatpush1.bf16.msra.mxu0 0
  %231 = vmatprep.subr.bf16.mxu0 0
  %232 = vmatpush1.bf16.msra.mxu0 0
  %233 = vmatprep.subr.bf16.mxu0 0
  %234 = vmatpush1.bf16.msra.mxu0 0
  %235 = vmatprep.subr.bf16.mxu0 0
  %236 = vmatpush1.bf16.msra.mxu0 0
  %237 = vmatprep.subr.bf16.mxu0 0
  %238 = vmatpush1.bf16.msra.mxu0 0
  %239 = vmatprep.subr.bf16.mxu0 0
  %240 = vmatpush1.bf16.msra.mxu0 0
  %241 = vmatprep.subr.bf16.mxu0 0
  %242 = vmatpush1.bf16.msra.mxu0 0
  %243 = vmatprep.subr.bf16.mxu0 0
  %244 = vmatpush1.bf16.msra.mxu0 0
  %245 = vmatprep.mubr.bf16.mxu0 0
  %246 = vmatmul.mubr.bf16.gmra.mrb[0].mxu0 %v211
  %v247 = vpop.f32.mrb[0].mxu0
  %v248 = vadd.f32 0.0, %v247
  %v249 = vpop.f32.mrb[0].mxu0
  %v250 = vpop.f32.mrb[0].mxu0
  %v251 = vpop.f32.mrb[0].mxu0
  %252 = vdwg.mxu0
  %v253 = vpack.c.bf16 %v248, %v248
  %v258 = vunpack.c.l.b16 %v28
  %v259 = vunpack.c.l.b16 %v29
  %v260 = vunpack.c.l.b16 %v30
  %v261 = vunpack.c.l.b16 %v31
  %v262 = vpack.c.b16 %v259, %v258
  %v263 = vpack.c.b16 %v261, %v260
  %v267 = vsel %vm80, %v253, 0
  %269 = vmatprep.subr.bf16.mxu0 0
  %270 = vmatpush1.bf16.msra.mxu0 %v262
  %271 = vmatprep.subr.bf16.mxu0 0
  %272 = vmatpush1.bf16.msra.mxu0 %v263
  %273 = vmatprep.subr.bf16.mxu0 0
  %274 = vmatpush1.bf16.msra.mxu0 0
  %275 = vmatprep.subr.bf16.mxu0 0
  %276 = vmatpush1.bf16.msra.mxu0 0
  %277 = vmatprep.subr.bf16.mxu0 0
  %278 = vmatpush1.bf16.msra.mxu0 0
  %279 = vmatprep.subr.bf16.mxu0 0
  %280 = vmatpush1.bf16.msra.mxu0 0
  %281 = vmatprep.subr.bf16.mxu0 0
  %282 = vmatpush1.bf16.msra.mxu0 0
  %283 = vmatprep.subr.bf16.mxu0 0
  %284 = vmatpush1.bf16.msra.mxu0 0
  %285 = vmatprep.subr.bf16.mxu0 0
  %286 = vmatpush1.bf16.msra.mxu0 0
  %287 = vmatprep.subr.bf16.mxu0 0
  %288 = vmatpush1.bf16.msra.mxu0 0
  %289 = vmatprep.subr.bf16.mxu0 0
  %290 = vmatpush1.bf16.msra.mxu0 0
  %291 = vmatprep.subr.bf16.mxu0 0
  %292 = vmatpush1.bf16.msra.mxu0 0
  %293 = vmatprep.subr.bf16.mxu0 0
  %294 = vmatpush1.bf16.msra.mxu0 0
  %295 = vmatprep.subr.bf16.mxu0 0
  %296 = vmatpush1.bf16.msra.mxu0 0
  %297 = vmatprep.subr.bf16.mxu0 0
  %298 = vmatpush1.bf16.msra.mxu0 0
  %299 = vmatprep.subr.bf16.mxu0 0
  %300 = vmatpush1.bf16.msra.mxu0 0
  %301 = vmatprep.mubr.bf16.mxu0 0
  %302 = vmatmul.mubr.bf16.gmra.mrb[0].mxu0 %v267
  %v303 = vpop.f32.mrb[0].mxu0
  %v304 = vadd.f32 %v50, %v303
  %v305 = vpop.f32.mrb[0].mxu0
  %v306 = vpop.f32.mrb[0].mxu0
  %v307 = vpop.f32.mrb[0].mxu0
  %308 = vdwg.mxu0
  %v309 = vld [vmem:[%s2] sm:$0xf]
  %vm310 = vcmask 64512
  %v312 = vsel %vm310, %v309, 0
  %vm314 = vcmask 1043456
  %v316 = vsel %vm314, %v32, 0
  %318 = vmatprep.subr.bf16.mxu0 0
  %319 = vmatpush1.bf16.msra.mxu0 %v316
  %320 = vmatprep.subr.bf16.mxu0 0
  %321 = vmatpush1.bf16.msra.mxu0 0
  %322 = vmatprep.subr.bf16.mxu0 0
  %323 = vmatpush1.bf16.msra.mxu0 0
  %324 = vmatprep.subr.bf16.mxu0 0
  %325 = vmatpush1.bf16.msra.mxu0 0
  %326 = vmatprep.subr.bf16.mxu0 0
  %327 = vmatpush1.bf16.msra.mxu0 0
  %328 = vmatprep.subr.bf16.mxu0 0
  %329 = vmatpush1.bf16.msra.mxu0 0
  %330 = vmatprep.subr.bf16.mxu0 0
  %331 = vmatpush1.bf16.msra.mxu0 0
  %332 = vmatprep.subr.bf16.mxu0 0
  %333 = vmatpush1.bf16.msra.mxu0 0
  %334 = vmatprep.subr.bf16.mxu0 0
  %335 = vmatpush1.bf16.msra.mxu0 0
  %336 = vmatprep.subr.bf16.mxu0 0
  %337 = vmatpush1.bf16.msra.mxu0 0
  %338 = vmatprep.subr.bf16.mxu0 0
  %339 = vmatpush1.bf16.msra.mxu0 0
  %340 = vmatprep.subr.bf16.mxu0 0
  %341 = vmatpush1.bf16.msra.mxu0 0
  %342 = vmatprep.subr.bf16.mxu0 0
  %343 = vmatpush1.bf16.msra.mxu0 0
  %344 = vmatprep.subr.bf16.mxu0 0
  %345 = vmatpush1.bf16.msra.mxu0 0
  %346 = vmatprep.subr.bf16.mxu0 0
  %347 = vmatpush1.bf16.msra.mxu0 0
  %348 = vmatprep.subr.bf16.mxu0 0
  %349 = vmatpush1.bf16.msra.mxu0 0
  %350 = vmatprep.mubr.bf16.mxu0 0
  %351 = vmatmul.mubr.bf16.gmra.mrb[0].mxu0 %v312
  %v352 = vpop.f32.mrb[0].mxu0
  %v353 = vadd.f32 0.0, %v352
  %v354 = vpop.f32.mrb[0].mxu0
  %v355 = vpop.f32.mrb[0].mxu0
  %v356 = vpop.f32.mrb[0].mxu0
  %357 = vdwg.mxu0
  %359 = vset.pattern.permute.xlu0 0
  %360 = vperm.xlu0 %359, %v53
  %v361 = vpop.permute.xlu0 %360
  %v363 = vmul.f32 %v353, %v361
  %v364 = vmax.f32 %v363, 0.0
  %vm365 = vcmask 392192
  %366 = vst.msk [vmem:[#allocation2] sm:$0xff] %vm365, %v364
  %v367 = vmax.f32 %v304, 0.0
  %369 = vrot.lane.b32.xlu0 %v367, 48
  %v370 = vpop.permute.xlu0 %369
  %vm372 = vcmask 523648
  %373 = vst.msk [vmem:[#allocation2] sm:$0xff] %vm372, %v370
  %v374 = vld [vmem:[#allocation2] sm:$0xff]
  %v375 = vpack.c.bf16 %v374, %v374
  %v376 = vlaneseq
  %v377 = vshrl.u32 %v376, 7
  %v378 = vsub.s32 0, %v377
  %v379 = vrot.slane %v51, %v378
  %v388 = vunpack.c.l.b16 %v33
  %v389 = vunpack.c.l.b16 %v34
  %v390 = vunpack.c.l.b16 %v35
  %v391 = vunpack.c.l.b16 %v36
  %v392 = vunpack.c.l.b16 %v37
  %v393 = vunpack.c.l.b16 %v38
  %v394 = vunpack.c.l.b16 %v39
  %v395 = vunpack.c.l.b16 %v40
  %v396 = vpack.c.b16 %v389, %v388
  %v397 = vpack.c.b16 %v391, %v390
  %v398 = vpack.c.b16 %v393, %v392
  %v399 = vpack.c.b16 %v395, %v394
  %vm404 = vcmask 523264
  %v406 = vsel %vm404, %v375, 0
  %408 = vmatprep.subr.bf16.mxu0 0
  %409 = vmatpush1.bf16.msra.mxu0 %v396
  %410 = vmatprep.subr.bf16.mxu0 0
  %411 = vmatpush1.bf16.msra.mxu0 %v397
  %412 = vmatprep.subr.bf16.mxu0 0
  %413 = vmatpush1.bf16.msra.mxu0 %v398
  %414 = vmatprep.subr.bf16.mxu0 0
  %415 = vmatpush1.bf16.msra.mxu0 %v399
  %416 = vmatprep.subr.bf16.mxu0 0
  %417 = vmatpush1.bf16.msra.mxu0 0
  %418 = vmatprep.subr.bf16.mxu0 0
  %419 = vmatpush1.bf16.msra.mxu0 0
  %420 = vmatprep.subr.bf16.mxu0 0
  %421 = vmatpush1.bf16.msra.mxu0 0
  %422 = vmatprep.subr.bf16.mxu0 0
  %423 = vmatpush1.bf16.msra.mxu0 0
  %424 = vmatprep.subr.bf16.mxu0 0
  %425 = vmatpush1.bf16.msra.mxu0 0
  %426 = vmatprep.subr.bf16.mxu0 0
  %427 = vmatpush1.bf16.msra.mxu0 0
  %428 = vmatprep.subr.bf16.mxu0 0
  %429 = vmatpush1.bf16.msra.mxu0 0
  %430 = vmatprep.subr.bf16.mxu0 0
  %431 = vmatpush1.bf16.msra.mxu0 0
  %432 = vmatprep.subr.bf16.mxu0 0
  %433 = vmatpush1.bf16.msra.mxu0 0
  %434 = vmatprep.subr.bf16.mxu0 0
  %435 = vmatpush1.bf16.msra.mxu0 0
  %436 = vmatprep.subr.bf16.mxu0 0
  %437 = vmatpush1.bf16.msra.mxu0 0
  %438 = vmatprep.subr.bf16.mxu0 0
  %439 = vmatpush1.bf16.msra.mxu0 0
  %440 = vmatprep.mubr.bf16.mxu0 0
  %441 = vmatmul.mubr.bf16.gmra.mrb[0].mxu0 %v406
  %v442 = vpop.f32.mrb[0].mxu0
  %v443 = vadd.f32 %v379, %v442
  %v444 = vpop.f32.mrb[0].mxu0
  %v445 = vpop.f32.mrb[0].mxu0
  %v446 = vpop.f32.mrb[0].mxu0
  %447 = vdwg.mxu0
  %v448 = vmax.f32 %v443, 0.0
  %v449 = vpack.c.bf16 %v448, %v448
  %v450 = vlaneseq
  %v451 = vshrl.u32 %v450, 7
  %v452 = vsub.s32 0, %v451
  %v453 = vrot.slane %v52, %v452
  %v462 = vunpack.c.l.b16 %v41
  %v463 = vunpack.c.l.b16 %v42
  %v464 = vunpack.c.l.b16 %v43
  %v465 = vunpack.c.l.b16 %v44
  %v466 = vunpack.c.l.b16 %v45
  %v467 = vunpack.c.l.b16 %v46
  %v468 = vunpack.c.l.b16 %v47
  %v469 = vunpack.c.l.b16 %v48
  %v470 = vpack.c.b16 %v463, %v462
  %v471 = vpack.c.b16 %v465, %v464
  %v472 = vpack.c.b16 %v467, %v466
  %v473 = vpack.c.b16 %v469, %v468
  %v479 = vsel %vm404, %v449, 0
  %481 = vmatprep.subr.bf16.mxu0 0
  %482 = vmatpush1.bf16.msra.mxu0 %v470
  %483 = vmatprep.subr.bf16.mxu0 0
  %484 = vmatpush1.bf16.msra.mxu0 %v471
  %485 = vmatprep.subr.bf16.mxu0 0
  %486 = vmatpush1.bf16.msra.mxu0 %v472
  %487 = vmatprep.subr.bf16.mxu0 0
  %488 = vmatpush1.bf16.msra.mxu0 %v473
  %489 = vmatprep.subr.bf16.mxu0 0
  %490 = vmatpush1.bf16.msra.mxu0 0
  %491 = vmatprep.subr.bf16.mxu0 0
  %492 = vmatpush1.bf16.msra.mxu0 0
  %493 = vmatprep.subr.bf16.mxu0 0
  %494 = vmatpush1.bf16.msra.mxu0 0
  %495 = vmatprep.subr.bf16.mxu0 0
  %496 = vmatpush1.bf16.msra.mxu0 0
  %497 = vmatprep.subr.bf16.mxu0 0
  %498 = vmatpush1.bf16.msra.mxu0 0
  %499 = vmatprep.subr.bf16.mxu0 0
  %500 = vmatpush1.bf16.msra.mxu0 0
  %501 = vmatprep.subr.bf16.mxu0 0
  %502 = vmatpush1.bf16.msra.mxu0 0
  %503 = vmatprep.subr.bf16.mxu0 0
  %504 = vmatpush1.bf16.msra.mxu0 0
  %505 = vmatprep.subr.bf16.mxu0 0
  %506 = vmatpush1.bf16.msra.mxu0 0
  %507 = vmatprep.subr.bf16.mxu0 0
  %508 = vmatpush1.bf16.msra.mxu0 0
  %509 = vmatprep.subr.bf16.mxu0 0
  %510 = vmatpush1.bf16.msra.mxu0 0
  %511 = vmatprep.subr.bf16.mxu0 0
  %512 = vmatpush1.bf16.msra.mxu0 0
  %513 = vmatprep.mubr.bf16.mxu0 0
  %514 = vmatmul.mubr.bf16.gmra.mrb[0].mxu0 %v479
  %v515 = vpop.f32.mrb[0].mxu0
  %v516 = vadd.f32 %v453, %v515
  %v517 = vpop.f32.mrb[0].mxu0
  %v518 = vpop.f32.mrb[0].mxu0
  %v519 = vpop.f32.mrb[0].mxu0
  %520 = vdwg.mxu0
  %v521 = vxor.u32 %v516, 2147483648
  %v522 = vmul.f32 %v521, 1.442695
  %v523 = vpow.pop %v522
  %v524 = vadd.f32 %v523, 1.0
  %v525 = vrcp.pop %v524
  %v526 = vmul.f32 1.0, %v525
  %v527 = vxor.u32 %v526, 2147483648
  %v528 = vmul.f32 %v527, 1.442695
  %v529 = vpow.pop %v528
  %v530 = vadd.f32 %v529, 1.0
  %v531 = vrcp.pop %v530
  %v532 = vmul.f32 1.0, %v531
  %533 = vst.msk [vmem:[%s5] sm:$0xff] %vm310, %v532
  // Predicated region
  $region22: #{my_pd_conv_forward.1} parent=0 // pred_check
    _
  $region23: #{my_pd_conv_forward.1} parent=0 // pred_check_branch
    %535 = sbr.rel (0) target = $region25
  $region24: #{my_pd_conv_forward.1} parent=0 // pred_region
    _
  $region25: #{my_pd_conv_forward.1} parent=0 // pred_fallthru
    _
  // Predicated region
  $region26: #{my_pd_conv_forward.1} parent=0 // pred_check
    _
  $region27: #{my_pd_conv_forward.1} parent=0 // pred_check_branch
    %537 = sbr.rel (0) target = $region29
  $region28: #{my_pd_conv_forward.1} parent=0 // pred_region
    _
  $region29: #{my_pd_conv_forward.1} parent=0 // pred_fallthru
    _

</llo_original>
